<compile_context>
chip_gen: v7x
topology: tpu7x:2x2x1
jax: 0.10.0
libtpu: 0.0.40
codegen_flags: <defaults>
</compile_context>

<pallas_src>
import functools

import jax
import jax.numpy as jnp
from jax.experimental import pallas as pl
from jax.experimental.pallas import tpu as pltpu


def _round_up(x, m):
    return ((x + m - 1) // m) * m


def _round_down(x, m):
    return (x // m) * m


def _is_v7x_like():
    """Best-effort chip detection (v7x: 64 MiB VMEM / 2 TensorCores per chip)."""
    is_v7x = False
    try:
        kind = jax.devices()[0].device_kind.lower()
        is_v7x = "v7" in kind
    except Exception:
        pass
    try:
        vmem = int(getattr(pltpu.get_tpu_info(), "vmem_capacity_bytes", 0))
        if 0 < vmem <= 64 * 1024 * 1024:
            is_v7x = True
    except Exception:
        pass
    return is_v7x


def _layernorm2d_kernel(x_ref, w_ref, b_ref, o_ref, *, eps):
    # x_ref: (tile_n, C, tile_hw).  Every (n, hw) column is normalized over C
    # (axis=1), matching torch's mean/var over dim=1 of an NCHW tensor.
    x = x_ref[...].astype(jnp.float32)                      # (tn, C, t)
    mu = jnp.mean(x, axis=1, keepdims=True)                 # (tn, 1, t)
    # Two-pass (biased) variance: numerically safer than E[x^2] - mu^2.
    # (x - mu) is recomputed below instead of kept live across both passes.
    var = jnp.mean(jnp.square(x - mu), axis=1, keepdims=True)
    rstd = jax.lax.rsqrt(var + eps)                         # (tn, 1, t)
    w = w_ref[...].astype(jnp.float32)                      # (1, C, 1)
    b = b_ref[...].astype(jnp.float32)                      # (1, C, 1)
    o_ref[...] = ((x - mu) * (w * rstd) + b).astype(o_ref.dtype)


def _plan_tiles(N, C, HW, itemsize, *, is_v7x):
    """Pick (tile_n, tile_hw, vmem_cap, c_pad): dtype- and chip-aware."""
    # Working set per block element:
    #   4 * itemsize -> double-buffered input + output pipeline buffers
    #   3 * 4        -> ~3 block-sized f32 temporaries inside the kernel body
    per_elem = 4 * itemsize + 3 * 4
    if is_v7x:
        working_budget = 40 * 1024 * 1024   # stay well inside 64 MiB physical
        vmem_cap = 48 * 1024 * 1024
    else:
        working_budget = 48 * 1024 * 1024   # v5e/v6e: 128 MiB physical, generous
        vmem_cap = 64 * 1024 * 1024
    tile_elems = max(1, working_budget // per_elem)

    # Sublane packing of C (8 for f32, 16 for bf16, 32 for 8-bit) and lane
    # padding of HW: budget in *padded* element counts.
    sublane_pack = max(8, 32 // max(int(itemsize), 1))
    c_pad = _round_up(C, sublane_pack)
    slab_elems = c_pad * _round_up(HW, 128)                 # one image, padded

    if slab_elems <= tile_elems:
        # Small per-image slab: block over N, keep the full HW in each block.
        tile_n = max(1, min(N, tile_elems // slab_elems))
        tile_hw = HW
    else:
        # Large per-image slab: one image per block, lane-aligned HW tiles.
        tile_n = 1
        tile_hw = max(128, _round_down(tile_elems // c_pad, 128))

    # v7x has 2 TensorCores: guarantee >=2 grid steps along a parallel axis.
    if is_v7x and pl.cdiv(N, tile_n) * pl.cdiv(HW, tile_hw) <= 1:
        if N >= 2:
            tile_n = pl.cdiv(N, 2)
        elif HW >= 256:
            tile_hw = _round_up(pl.cdiv(HW, 2), 128)

    return tile_n, tile_hw, vmem_cap, c_pad


def _vmem_limit(tile_n, c_pad, tile_hw, itemsize, vmem_cap):
    """Explicit scoped-VMEM budget: pipeline buffers + f32 temporaries + slack."""
    lane_hw = _round_up(tile_hw, 128)
    block_io = tile_n * c_pad * lane_hw * itemsize          # one in/out block
    block_f32 = tile_n * c_pad * lane_hw * 4                # one f32 temporary
    slack = 2 * 1024 * 1024                                  # w/b + Mosaic scratch
    limit = 4 * block_io + 3 * block_f32 + slack
    return int(min(vmem_cap, max(32 * 1024 * 1024, limit)))


def layernorm2d(x_nchw, weight, bias, eps=1e-6, *, tile_n=None, tile_hw=None):
    """Equivalent of LayerNorm2d.forward for NCHW input (forward only)."""
    N, C, H, W = x_nchw.shape
    HW = H * W
    itemsize = int(jnp.dtype(x_nchw.dtype).itemsize)

    x3 = x_nchw.reshape(N, C, HW)          # contiguous reshape — no transpose
    w3 = weight.reshape(1, C, 1)
    b3 = bias.reshape(1, C, 1)

    is_v7x = _is_v7x_like()
    auto_tn, auto_thw, vmem_cap, c_pad = _plan_tiles(N, C, HW, itemsize,
                                                     is_v7x=is_v7x)
    tile_n = auto_tn if tile_n is None else int(tile_n)
    tile_hw = auto_thw if tile_hw is None else int(tile_hw)

    # cdiv grid: masked tails handle N % tile_n and HW % tile_hw.  The masked
    # rows/lanes cannot contaminate valid outputs because the reduction is
    # strictly per (n, hw) column and OOB writes are discarded.
    grid = (pl.cdiv(N, tile_n), pl.cdiv(HW, tile_hw))
    vmem_limit = _vmem_limit(tile_n, c_pad, tile_hw, itemsize, vmem_cap)

    kernel = functools.partial(_layernorm2d_kernel, eps=float(eps))

    out3 = pl.pallas_call(
        kernel,
        out_shape=jax.ShapeDtypeStruct((N, C, HW), x_nchw.dtype),
        grid_spec=pltpu.PrefetchScalarGridSpec(
            num_scalar_prefetch=0,
            grid=grid,
            in_specs=[
                pl.BlockSpec((tile_n, C, tile_hw), lambda i, j: (i, 0, j)),  # x
                pl.BlockSpec((1, C, 1), lambda i, j: (0, 0, 0)),             # weight
                pl.BlockSpec((1, C, 1), lambda i, j: (0, 0, 0)),             # bias
            ],
            out_specs=pl.BlockSpec((tile_n, C, tile_hw), lambda i, j: (i, 0, j)),
        ),
        compiler_params=pltpu.CompilerParams(
            dimension_semantics=("parallel", "parallel"),
            vmem_limit_bytes=vmem_limit,
        ),
    )(x3, w3, b3)

    return out3.reshape(N, C, H, W)


def layernorm2d_ref(x, weight, bias, eps=1e-6):
    # Pure-JAX reference matching the torch forward exactly (NCHW), in f32.
    xf = x.astype(jnp.float32)
    mu = jnp.mean(xf, axis=1, keepdims=True)
    var = jnp.mean((xf - mu) ** 2, axis=1, keepdims=True)
    y = (xf - mu) / jnp.sqrt(var + eps)
    C = x.shape[1]
    wf = weight.astype(jnp.float32).reshape(1, C, 1, 1)
    bf = bias.astype(jnp.float32).reshape(1, C, 1, 1)
    return wf * y + bf


# TODO(synk): only the forward pass is implemented; the custom autograd
# backward of LayerNormFunction is not translated.

if __name__ == "__main__":
    key = jax.random.PRNGKey(0)
    kx, kw, kb, kx2, kx3, kx4 = jax.random.split(key, 6)

    # 1) Primary test: module-consistent small shape (auto plan -> N-blocked).
    N, C, H, W = 2, 4, 16, 16
    x = jax.random.normal(kx, (N, C, H, W), dtype=jnp.float32)
    weight = 1.0 + 0.1 * jax.random.normal(kw, (C,), dtype=jnp.float32)
    bias = 0.05 * jax.random.normal(kb, (C,), dtype=jnp.float32)
    out = jax.block_until_ready(layernorm2d(x, weight, bias, eps=1e-6))
    ref = layernorm2d_ref(x, weight, bias, eps=1e-6)
    assert out.shape == (N, C, H, W)
    assert jnp.allclose(out, ref, atol=1e-5, rtol=1e-5), "mismatch vs reference"

    # 2) HW-tail test: H*W not a multiple of the lane tile (400 = 3*128 + 16).
    N2, C2, H2, W2 = 1, 6, 20, 20
    x2 = jax.random.normal(kx2, (N2, C2, H2, W2), dtype=jnp.float32)
    w2 = jnp.ones((C2,), dtype=jnp.float32)
    b2 = jnp.zeros((C2,), dtype=jnp.float32)
    out2 = jax.block_until_ready(layernorm2d(x2, w2, b2, eps=1e-6, tile_hw=128))
    ref2 = layernorm2d_ref(x2, w2, b2, eps=1e-6)
    assert jnp.allclose(out2, ref2, atol=1e-5, rtol=1e-5), "HW-tail mismatch"

    # 3) N-tail test: N not a multiple of tile_n (3 = 2 + masked 1).
    N3, C3, H3, W3 = 3, 8, 8, 8
    x3 = jax.random.normal(kx3, (N3, C3, H3, W3), dtype=jnp.float32)
    w3 = 1.0 + 0.1 * jax.random.normal(kw, (C3,), dtype=jnp.float32)
    b3 = 0.05 * jax.random.normal(kb, (C3,), dtype=jnp.float32)
    out3 = jax.block_until_ready(layernorm2d(x3, w3, b3, eps=1e-6, tile_n=2))
    ref3 = layernorm2d_ref(x3, w3, b3, eps=1e-6)
    assert jnp.allclose(out3, ref3, atol=1e-5, rtol=1e-5), "N-tail mismatch"

    # 4) bf16 input: exercises the dtype-aware tiling path (f32 compute inside).
    x4 = jax.random.normal(kx4, (N, C, H, W), dtype=jnp.float32).astype(jnp.bfloat16)
    out4 = jax.block_until_ready(layernorm2d(x4, weight, bias, eps=1e-6))
    ref4 = layernorm2d_ref(x4, weight, bias, eps=1e-6)
    assert out4.dtype == jnp.bfloat16
    assert jnp.allclose(out4.astype(jnp.float32), ref4, atol=3e-2, rtol=3e-2), \
        "bf16 mismatch"

    print("KERNEL_OK")
</pallas_src>

<mosaic_0001>
module attributes {stable_mosaic.version = 11 : i64} {
  func.func @_layernorm2d_kernel(%arg0: i32, %arg1: i32, %arg2: memref<2x4x256xf32, #tpu.memory_space<vmem>>, %arg3: memref<1x4x1xf32, #tpu.memory_space<vmem>>, %arg4: memref<1x4x1xf32, #tpu.memory_space<vmem>>, %arg5: memref<2x4x256xf32, #tpu.memory_space<vmem>>) attributes {dimension_semantics = [#tpu.dimension_semantics<parallel>, #tpu.dimension_semantics<parallel>], iteration_bounds = array<i64: 1, 1>, scalar_prefetch = 0 : i64, scratch_operands = 0 : i64, tpu.core_type = #tpu.core_type<tc>, window_params = [{transform_indices = @transform_0, window_bounds = array<i64: 2, 4, 256>}, {pipeline_mode = #tpu.pipeline_mode<synchronous>, transform_indices = @transform_1, window_bounds = array<i64: 1, 4, 1>}, {pipeline_mode = #tpu.pipeline_mode<synchronous>, transform_indices = @transform_2, window_bounds = array<i64: 1, 4, 1>}, {transform_indices = @transform_3, window_bounds = array<i64: 2, 4, 256>}]} {
    %c0 = arith.constant 0 : index
    %c0_0 = arith.constant 0 : index
    %c0_1 = arith.constant 0 : index
    %0 = vector.load %arg2[%c0, %c0_0, %c0_1] : memref<2x4x256xf32, #tpu.memory_space<vmem>>, vector<2x4x256xf32>
    %cst = arith.constant dense<0.000000e+00> : vector<2x256xf32>
    %1 = vector.multi_reduction <add>, %0, %cst [1] : vector<2x4x256xf32> to vector<2x256xf32>
    %2 = vector.shape_cast %1 : vector<2x256xf32> to vector<2x1x256xf32>
    %cst_2 = arith.constant 4.000000e+00 : f32
    %3 = vector.broadcast %cst_2 : f32 to vector<2x1x256xf32>
    %4 = arith.divf %2, %3 : vector<2x1x256xf32>
    %5 = vector.broadcast %4 : vector<2x1x256xf32> to vector<2x4x256xf32>
    %6 = arith.subf %0, %5 : vector<2x4x256xf32>
    %7 = arith.mulf %6, %6 : vector<2x4x256xf32>
    %cst_3 = arith.constant dense<0.000000e+00> : vector<2x256xf32>
    %8 = vector.multi_reduction <add>, %7, %cst_3 [1] : vector<2x4x256xf32> to vector<2x256xf32>
    %9 = vector.shape_cast %8 : vector<2x256xf32> to vector<2x1x256xf32>
    %cst_4 = arith.constant 4.000000e+00 : f32
    %10 = vector.broadcast %cst_4 : f32 to vector<2x1x256xf32>
    %11 = arith.divf %9, %10 : vector<2x1x256xf32>
    %cst_5 = arith.constant 9.99999997E-7 : f32
    %12 = vector.broadcast %cst_5 : f32 to vector<2x1x256xf32>
    %13 = arith.addf %11, %12 : vector<2x1x256xf32>
    %14 = math.rsqrt %13 : vector<2x1x256xf32>
    %c0_6 = arith.constant 0 : index
    %c0_7 = arith.constant 0 : index
    %c0_8 = arith.constant 0 : index
    %15 = vector.load %arg3[%c0_6, %c0_7, %c0_8] : memref<1x4x1xf32, #tpu.memory_space<vmem>>, vector<1x4x1xf32>
    %c0_9 = arith.constant 0 : index
    %c0_10 = arith.constant 0 : index
    %c0_11 = arith.constant 0 : index
    %16 = vector.load %arg4[%c0_9, %c0_10, %c0_11] : memref<1x4x1xf32, #tpu.memory_space<vmem>>, vector<1x4x1xf32>
    %17 = vector.broadcast %4 : vector<2x1x256xf32> to vector<2x4x256xf32>
    %18 = arith.subf %0, %17 : vector<2x4x256xf32>
    %19 = vector.broadcast %15 : vector<1x4x1xf32> to vector<2x4x256xf32>
    %20 = vector.broadcast %14 : vector<2x1x256xf32> to vector<2x4x256xf32>
    %21 = arith.mulf %19, %20 : vector<2x4x256xf32>
    %22 = arith.mulf %18, %21 : vector<2x4x256xf32>
    %23 = vector.broadcast %16 : vector<1x4x1xf32> to vector<2x4x256xf32>
    %24 = arith.addf %22, %23 : vector<2x4x256xf32>
    %c0_12 = arith.constant 0 : index
    %c0_13 = arith.constant 0 : index
    %c0_14 = arith.constant 0 : index
    %25 = vector.load %arg5[%c0_12, %c0_13, %c0_14] : memref<2x4x256xf32, #tpu.memory_space<vmem>>, vector<2x4x256xf32>
    tpu.vector_store %arg5[%c0_12, %c0_13, %c0_14], %24 {strides = array<i32>} : memref<2x4x256xf32, #tpu.memory_space<vmem>>, vector<2x4x256xf32>,
    return
  }
  func.func @transform_0(%arg0: i32, %arg1: i32) -> (i32, i32, i32) {
    %c0_i32 = arith.constant 0 : i32
    %c0_i32_0 = arith.constant 0 : i32
    return %arg0, %c0_i32, %arg1 : i32, i32, i32
  }
  func.func @transform_1(%arg0: i32, %arg1: i32) -> (i32, i32, i32) {
    %c0_i32 = arith.constant 0 : i32
    %c0_i32_0 = arith.constant 0 : i32
    %c0_i32_1 = arith.constant 0 : i32
    %c0_i32_2 = arith.constant 0 : i32
    return %c0_i32, %c0_i32_0, %c0_i32_1 : i32, i32, i32
  }
  func.func @transform_2(%arg0: i32, %arg1: i32) -> (i32, i32, i32) {
    %c0_i32 = arith.constant 0 : i32
    %c0_i32_0 = arith.constant 0 : i32
    %c0_i32_1 = arith.constant 0 : i32
    %c0_i32_2 = arith.constant 0 : i32
    return %c0_i32, %c0_i32_0, %c0_i32_1 : i32, i32, i32
  }
  func.func @transform_3(%arg0: i32, %arg1: i32) -> (i32, i32, i32) {
    %c0_i32 = arith.constant 0 : i32
    %c0_i32_0 = arith.constant 0 : i32
    return %arg0, %c0_i32, %arg1 : i32, i32, i32
  }
}

</mosaic_0001>

<llo_original>
// kernel: tpu_custom_call.1
$region0: #{tpu_custom_call.1}
  #allocation0 [shape = 'u32[]', space=smem, size = 0x4, offset = 0x4, fixed_abs, tag = 'smem constant byte address 0x4 - core index']
  #allocation1 [shape = 'u32[144,128]{1,0:T(1,128)}', space=vmem, size = 0x12000, scoped, tag = 'internal scratch']
  %s0 = inlined_call_operand.hbm [shape: f32[2,4,256], index: 0, kind: input, shape index: {}]
  %s1 = inlined_call_operand.vmem [shape: f32[1,4,1], index: 1, kind: input, shape index: {}]
  %s2 = inlined_call_operand.vmem [shape: f32[1,4,1], index: 2, kind: input, shape index: {}]
  %s3 = inlined_call_operand.hbm [shape: f32[2,4,256], index: 3, kind: output, shape index: {}]
  %s4 = sld [smem:[#allocation0]]
  $region26: #{tpu_custom_call.1} parent=0
    _
  %s6 = ssub.s32 1, %s4
  %s7 = scalar_select 0, %s6, %s4
  $region1: #{tpu_custom_call.1} parent=0
    #allocation2 [shape = 'u8[8192]{0}', space=vmem, size = 0x2000, scoped, tag = 'input window, operand 0, single buffered']
    #allocation3 [shape = 's32[1]{0}', space=sflag, size = 0x4, scoped, tag = 'scoped memory for tpu_custom_call.1']
    #allocation4 [shape = 's32[1]{0}', space=sflag, size = 0x4, scoped, tag = 'scoped memory for tpu_custom_call.1']
    #allocation5 [shape = 'u8[8192]{0}', space=vmem, size = 0x2000, scoped, tag = 'output window, operand 0, single buffered']
    %8 = vsyncpa [#allocation3], 0
    %9 = vsyncpa [#allocation4], 0
    // Predicated region
    $region2: #{tpu_custom_call.1} parent=1 // pred_check
      _
    $region3: #{tpu_custom_call.1} parent=1 // pred_check_branch
      %11 = sbr.rel (0) target = $region5
    $region4: #{tpu_custom_call.1} parent=1 // pred_region
      %s13 = ssub.s32 256, 256
      %14 = vsyncadd [#allocation3], %s13
      %s15 = sshll.u32 [#allocation2], 4
      %s16 = int_to_ptr.vmem [resolvable:$true] %s15
      %21 = dma.hbm_to_vmem [thread:$0]  %s0, 256, %s16, [#allocation3], 128, 128, 8
    $region5: #{tpu_custom_call.1} parent=1 // pred_fallthru
      _
    // Predicated region
    $region6: #{tpu_custom_call.1} parent=1 // pred_check
      _
    $region7: #{tpu_custom_call.1} parent=1 // pred_check_branch
      %23 = sbr.rel (0) target = $region9
    $region8: #{tpu_custom_call.1} parent=1 // pred_region
      _
    $region9: #{tpu_custom_call.1} parent=1 // pred_fallthru
      _
    // Predicated region
    $region10: #{tpu_custom_call.1} parent=1 // pred_check
      _
    $region11: #{tpu_custom_call.1} parent=1 // pred_check_branch
      %25 = sbr.rel (0) target = $region13
    $region12: #{tpu_custom_call.1} parent=1 // pred_region
      _
    $region13: #{tpu_custom_call.1} parent=1 // pred_fallthru
      _
    // Predicated region
    $region14: #{tpu_custom_call.1} parent=1 // pred_check
      _
    $region15: #{tpu_custom_call.1} parent=1 // pred_check_branch
      %27 = sbr.rel (0) target = $region17
    $region16: #{tpu_custom_call.1} parent=1 // pred_region
      %28 = dma.done [#allocation3], 256
    $region17: #{tpu_custom_call.1} parent=1 // pred_fallthru
      _
    %v29 = vld [vmem:[#allocation2] sm:$0xff]
    %v30 = vld [vmem:[#allocation2 + $0x8] sm:$0xff]
    %v33 = vcombine.high %v29, %v29
    %v34 = vcombine.high %v30, %v30
    %vm37 = vcmask 1043456
    %v38 = vsel %vm37, %v29, 0.0
    %v39 = vrot.slane %v38, 4
    %v40 = vadd.f32 %v38, %v39
    %v41 = vrot.slane %v40, 2
    %v42 = vadd.f32 %v40, %v41
    %v43 = vrot.slane %v42, 1
    %v44 = vadd.f32 %v42, %v43
    %v45 = vsel %vm37, %v33, 0.0
    %v46 = vrot.slane %v45, 4
    %v47 = vadd.f32 %v45, %v46
    %v48 = vrot.slane %v47, 2
    %v49 = vadd.f32 %v47, %v48
    %v50 = vrot.slane %v49, 1
    %v51 = vadd.f32 %v49, %v50
    %v52 = vsel %vm37, %v30, 0.0
    %v53 = vrot.slane %v52, 4
    %v54 = vadd.f32 %v52, %v53
    %v55 = vrot.slane %v54, 2
    %v56 = vadd.f32 %v54, %v55
    %v57 = vrot.slane %v56, 1
    %v58 = vadd.f32 %v56, %v57
    %v59 = vsel %vm37, %v34, 0.0
    %v60 = vrot.slane %v59, 4
    %v61 = vadd.f32 %v59, %v60
    %v62 = vrot.slane %v61, 2
    %v63 = vadd.f32 %v61, %v62
    %v64 = vrot.slane %v63, 1
    %v65 = vadd.f32 %v63, %v64
    %v66 = vrcp.pop 4.0
    %v67 = vmul.f32 %v44, %v66
    %v68 = vmul.f32 %v51, %v66
    %v69 = vmul.f32 %v58, %v66
    %v70 = vmul.f32 %v65, %v66
    %v75 = vcombine.low %v67, %v68
    %v76 = vcombine.low %v69, %v70
    %v79 = vsub.f32 %v29, %v75
    %v80 = vsub.f32 %v30, %v76
    %v81 = vmul.f32 %v79, %v79
    %v82 = vmul.f32 %v80, %v80
    %v85 = vcombine.high %v81, %v81
    %v86 = vcombine.high %v82, %v82
    %v89 = vsel %vm37, %v81, 0.0
    %v90 = vrot.slane %v89, 4
    %v91 = vadd.f32 %v89, %v90
    %v92 = vrot.slane %v91, 2
    %v93 = vadd.f32 %v91, %v92
    %v94 = vrot.slane %v93, 1
    %v95 = vadd.f32 %v93, %v94
    %v96 = vsel %vm37, %v85, 0.0
    %v97 = vrot.slane %v96, 4
    %v98 = vadd.f32 %v96, %v97
    %v99 = vrot.slane %v98, 2
    %v100 = vadd.f32 %v98, %v99
    %v101 = vrot.slane %v100, 1
    %v102 = vadd.f32 %v100, %v101
    %v103 = vsel %vm37, %v82, 0.0
    %v104 = vrot.slane %v103, 4
    %v105 = vadd.f32 %v103, %v104
    %v106 = vrot.slane %v105, 2
    %v107 = vadd.f32 %v105, %v106
    %v108 = vrot.slane %v107, 1
    %v109 = vadd.f32 %v107, %v108
    %v110 = vsel %vm37, %v86, 0.0
    %v111 = vrot.slane %v110, 4
    %v112 = vadd.f32 %v110, %v111
    %v113 = vrot.slane %v112, 2
    %v114 = vadd.f32 %v112, %v113
    %v115 = vrot.slane %v114, 1
    %v116 = vadd.f32 %v114, %v115
    %v117 = vmul.f32 %v95, %v66
    %v118 = vmul.f32 %v102, %v66
    %v119 = vmul.f32 %v109, %v66
    %v120 = vmul.f32 %v116, %v66
    %v121 = vadd.f32 %v117, 1e-06
    %v122 = vadd.f32 %v118, 1e-06
    %v123 = vadd.f32 %v119, 1e-06
    %v124 = vadd.f32 %v120, 1e-06
    %v125 = vrsqrt.pop %v121
    %v126 = vrsqrt.pop %v122
    %v127 = vrsqrt.pop %v123
    %v128 = vrsqrt.pop %v124
    %v129 = vld [vmem:[%s1] sm:$0xf]
    %v130 = vld [vmem:[%s2] sm:$0xf]
    %132 = vset.pattern.permute.xlu0 0
    %133 = vperm.xlu0 %132, %v129
    %v134 = vpop.permute.xlu0 %133
    %v136 = vmul.f32 %v134, %v125
    %v137 = vmul.f32 %v134, %v126
    %v138 = vmul.f32 %v134, %v127
    %v139 = vmul.f32 %v134, %v128
    %v144 = vcombine.low %v136, %v137
    %v145 = vcombine.low %v138, %v139
    %v148 = vmul.f32 %v79, %v144
    %v149 = vmul.f32 %v80, %v145
    %151 = vset.pattern.permute.xlu0 0
    %152 = vperm.xlu0 %151, %v130
    %v153 = vpop.permute.xlu0 %152
    %v155 = vunpack.c.l.s4 839922192
    %v156 = vunpack.c.0.s8 %v155
    %v157 = vlaneseq
    %v158 = vshrl.u32 %v157, 7
    %v159 = vsub.s32 %v156, %v158
    %v160 = vrot.slane %v153, %v159
    %v162 = vadd.f32 %v148, %v160
    %v163 = vadd.f32 %v149, %v160
    %164 = vst [vmem:[#allocation5] sm:$0xff] %v162
    %165 = vst [vmem:[#allocation5 + $0x8] sm:$0xff] %v163
    // Predicated region
    $region18: #{tpu_custom_call.1} parent=1 // pred_check
      _
    $region19: #{tpu_custom_call.1} parent=1 // pred_check_branch
      %167 = sbr.rel (0) target = $region21
    $region20: #{tpu_custom_call.1} parent=1 // pred_region
      %s169 = ssub.s32 256, 256
      %170 = vsyncadd [#allocation4], %s169
      %s171 = sshll.u32 [#allocation5], 4
      %s172 = int_to_ptr.vmem [resolvable:$true] %s171
      %177 = dma.vmem_to_hbm [thread:$0]  %s172, 256, %s3, [#allocation4], 128, 128, 8
    $region21: #{tpu_custom_call.1} parent=1 // pred_fallthru
      _
    // Predicated region
    $region22: #{tpu_custom_call.1} parent=1 // pred_check
      _
    $region23: #{tpu_custom_call.1} parent=1 // pred_check_branch
      %179 = sbr.rel (0) target = $region25
    $region24: #{tpu_custom_call.1} parent=1 // pred_region
      %180 = dma.done [#allocation4], 256
    $region25: #{tpu_custom_call.1} parent=1 // pred_fallthru
      _
    %181 = vsyncpa [#allocation3], 1
    %182 = vsyncpa [#allocation4], 1

</llo_original>
